<compile_context>
chip_gen: v7x
topology: tpu7x:2x2x1
jax: 0.10.0
libtpu: 0.0.40
codegen_flags: <defaults>
</compile_context>

<pallas_src>
import functools

import jax
import jax.numpy as jnp
from jax.experimental import pallas as pl
from jax.experimental.pallas import tpu as pltpu

_LANES = 128                     # lane width of a vreg (last-dim fast axis)
_TARGET_BLOCK_BYTES = 4 << 20    # ~4 MiB per block (lane-padded accounting)
_VMEM_LIMIT_BYTES = 32 << 20     # 16 MiB live (in+out, double-buffered) + slack


def _identity_kernel(x_ref, o_ref):
    # Pure pass-through: the only tensor semantics a `pass` forward could have.
    o_ref[...] = x_ref[...]


def _packed_sublanes(itemsize: int) -> int:
    """Packed sublane tile height: 8 for 4B, 16 for 2B, 32 for 1B dtypes."""
    return max(8, 32 // max(1, itemsize))


def _slab_shape(total: int) -> tuple:
    """(rows, cols) with cols the largest divisor of total that is <= 128."""
    if total % _LANES == 0:
        return total // _LANES, _LANES
    for d in range(min(_LANES, total), 0, -1):
        if total % d == 0:
            return total // d, d
    return total, 1  # unreachable (d=1 always divides)


def _pallas_identity_2d(x2d: jax.Array) -> jax.Array:
    """Row-tiled, auto-pipelined identity copy of a 2D slab (cols <= 128)."""
    rows, cols = x2d.shape
    itemsize = jnp.dtype(x2d.dtype).itemsize
    sub = _packed_sublanes(itemsize)

    # Bound the VMEM footprint using the lane-PADDED width (cols pads to 128
    # in VMEM), so narrow slabs cannot blow the scoped VMEM budget.
    padded_cols = ((cols + _LANES - 1) // _LANES) * _LANES
    target_rows = max(sub, (_TARGET_BLOCK_BYTES // (padded_cols * itemsize)) // sub * sub)

    if rows <= target_rows:
        # Whole slab fits in one (bounded-size) block; block == full array
        # dims, so no (8,128) divisibility requirement applies.
        tr = rows
    else:
        # Tiled path: block rows are a multiple of the packed sublane tile;
        # a partial final block (rows % tr != 0) is masked by Pallas.
        tr = min(target_rows, (rows // sub) * sub)
        tr = max(tr, sub)
    grid = (pl.cdiv(rows, tr),)

    return pl.pallas_call(
        _identity_kernel,
        out_shape=jax.ShapeDtypeStruct(x2d.shape, x2d.dtype),
        grid=grid,
        in_specs=[pl.BlockSpec((tr, cols), lambda i: (i, 0))],
        out_specs=pl.BlockSpec((tr, cols), lambda i: (i, 0)),
        input_output_aliases={0: 0},  # no separate output HBM allocation
        cost_estimate=pl.CostEstimate(
            flops=0,
            transcendentals=0,
            bytes_accessed=2 * rows * cols * itemsize,
        ),
        compiler_params=pltpu.CompilerParams(
            dimension_semantics=("parallel",),
            vmem_limit_bytes=_VMEM_LIMIT_BYTES,
        ),
    )(x2d)


@functools.partial(jax.jit)
def _pallas_identity(x: jax.Array) -> jax.Array:
    """Generic identity: flatten to a lane-dense slab and copy through VMEM."""
    total = x.size
    if total == 0:
        return x
    rows, cols = _slab_shape(total)
    x2d = x.reshape(rows, cols)          # metadata-only under jit
    y2d = _pallas_identity_2d(x2d)
    return y2d.reshape(x.shape)


class BaseModel:
    """JAX/Pallas port of the abstract PyTorch BaseModel."""

    def __init__(self):
        # The PyTorch __init__ registers no parameters/submodules.
        pass

    def forward(self, *inputs):
        # Reference forward is `pass` -> no compute, returns None.  Launching
        # any kernel here would be pure wasted HBM traffic (result discarded),
        # so none is launched.
        return None

    def __call__(self, *inputs):
        return self.forward(*inputs)

    def train_one_epoch(self, *inputs):
        # Abstract stub in the reference module.
        pass

    def predict(self, eval_users, eval_pos, test_batch_size):
        # Abstract stub in the reference module.
        pass


if __name__ == "__main__":
    key = jax.random.PRNGKey(0)
    # Small NCHW input consistent with a conv-style model family: [2, 4, 16, 16]
    x = jax.random.normal(key, (2, 4, 16, 16), dtype=jnp.float32)

    model = BaseModel()

    # Run the Pallas identity kernel once and verify pass-through semantics.
    y = _pallas_identity(x)
    jax.block_until_ready(y)
    assert y.shape == x.shape and y.dtype == x.dtype
    assert jnp.array_equal(y, x), "Pallas identity kernel mismatch"

    # Call the module forward like the PyTorch reference (returns None).
    out = model(x)
    assert out is None

    print("KERNEL_OK")
</pallas_src>

<mosaic_0001>
module attributes {stable_mosaic.version = 11 : i64} {
  func.func @_identity_kernel(%arg0: i32, %arg1: memref<16x128xf32, #tpu.memory_space<vmem>>, %arg2: memref<16x128xf32, #tpu.memory_space<vmem>>) attributes {dimension_semantics = [#tpu.dimension_semantics<parallel>], iteration_bounds = array<i64: 1>, scalar_prefetch = 0 : i64, scratch_operands = 0 : i64, tpu.core_type = #tpu.core_type<tc>, window_params = [{transform_indices = @transform_0, window_bounds = array<i64: 16, 128>}, {transform_indices = @transform_1, window_bounds = array<i64: 16, 128>}]} {
    %c0 = arith.constant 0 : index
    %c0_0 = arith.constant 0 : index
    %0 = vector.load %arg1[%c0, %c0_0] : memref<16x128xf32, #tpu.memory_space<vmem>>, vector<16x128xf32>
    %c0_1 = arith.constant 0 : index
    %c0_2 = arith.constant 0 : index
    %1 = vector.load %arg2[%c0_1, %c0_2] : memref<16x128xf32, #tpu.memory_space<vmem>>, vector<16x128xf32>
    tpu.vector_store %arg2[%c0_1, %c0_2], %0 {strides = array<i32>} : memref<16x128xf32, #tpu.memory_space<vmem>>, vector<16x128xf32>,
    return
  }
  func.func @transform_0(%arg0: i32) -> (i32, i32) {
    %c0_i32 = arith.constant 0 : i32
    %c0_i32_0 = arith.constant 0 : i32
    return %arg0, %c0_i32 : i32, i32
  }
  func.func @transform_1(%arg0: i32) -> (i32, i32) {
    %c0_i32 = arith.constant 0 : i32
    %c0_i32_0 = arith.constant 0 : i32
    return %arg0, %c0_i32 : i32, i32
  }
}

</mosaic_0001>

<llo_original>
// kernel: _pallas_identity.1
$region0: #{_pallas_identity.1}
  #allocation0 [shape = 'u32[]', space=smem, size = 0x4, offset = 0x4, fixed_abs, tag = 'smem constant byte address 0x4 - core index']
  #allocation1 [shape = 'u32[144,128]{1,0:T(1,128)}', space=vmem, size = 0x12000, scoped, tag = 'internal scratch']
  %s0 = inlined_call_operand.vmem [shape: f32[16,128], index: 0, kind: input, shape index: {}, may-alias: {0,1}]
  %s1 = inlined_call_operand.vmem [shape: f32[16,128], index: 1, kind: output, shape index: {}, may-alias: {0,1}]
  %s2 = sld [smem:[#allocation0]]
  $region14: #{_pallas_identity.1} parent=0
    _
  %s4 = ssub.s32 1, %s2
  %s5 = scalar_select 0, %s4, %s2
  // Predicated region
  $region2: #{_pallas_identity.1} parent=0 // pred_check
    _
  $region3: #{_pallas_identity.1} parent=0 // pred_check_branch
    %7 = sbr.rel (0) target = $region5
  $region4: #{_pallas_identity.1} parent=0 // pred_region
    _
  $region5: #{_pallas_identity.1} parent=0 // pred_fallthru
    _
  %v8 = vld [vmem:[%s0] sm:$0xff]
  %v9 = vld [vmem:[%s0 + $0x8] sm:$0xff]
  %10 = vst [vmem:[%s1] sm:$0xff] %v8
  %11 = vst [vmem:[%s1 + $0x8] sm:$0xff] %v9
  // Predicated region
  $region6: #{_pallas_identity.1} parent=0 // pred_check
    _
  $region7: #{_pallas_identity.1} parent=0 // pred_check_branch
    %13 = sbr.rel (0) target = $region9
  $region8: #{_pallas_identity.1} parent=0 // pred_region
    _
  $region9: #{_pallas_identity.1} parent=0 // pred_fallthru
    _
  // Predicated region
  $region10: #{_pallas_identity.1} parent=0 // pred_check
    _
  $region11: #{_pallas_identity.1} parent=0 // pred_check_branch
    %15 = sbr.rel (0) target = $region13
  $region12: #{_pallas_identity.1} parent=0 // pred_region
    _
  $region13: #{_pallas_identity.1} parent=0 // pred_fallthru
    _

</llo_original>
